<compile_context>
chip_gen: v7x
topology: tpu7x:2x2x1
jax: 0.10.0
libtpu: 0.0.40
codegen_flags: <defaults>
</compile_context>

<pallas_src>
import functools

import jax
import jax.numpy as jnp
from jax.experimental import pallas as pl
from jax.experimental.pallas import tpu as pltpu


def _round_up(x, m):
    return ((x + m - 1) // m) * m


def _supcon_kernel(lab_row_ref, lab_col_ref, rows_ref, fnT_ref, o_ref, *,
                   loss_scale, n_valid, mask_cols, mask_rows):
    """One [TM, N_cols] slab of the SupCon loss; writes per-anchor losses [TM, 1]."""
    tm = rows_ref.shape[0]
    row_start = pl.program_id(0) * tm

    # anchor_dot_contrast / temperature -> [TM, N_cols] f32 (MXU, f32 accumulation).
    # The 1/temperature scale is already folded into the anchor rows.
    sim = jax.lax.dot_general(
        rows_ref[...], fnT_ref[...],
        dimension_numbers=(((1,), (0,)), ((), ())),
        preferred_element_type=jnp.float32)

    # Self-contrast (diagonal) mask + validity of padded columns, built in-kernel.
    col_ids = jax.lax.broadcasted_iota(jnp.int32, sim.shape, 1)
    row_ids = jax.lax.broadcasted_iota(jnp.int32, sim.shape, 0) + row_start
    contrast_mask = row_ids != col_ids
    if mask_cols:
        contrast_mask = jnp.logical_and(contrast_mask, col_ids < n_valid)

    # Positive mask from labels: same class AND not self-contrast.
    pos_mask = jnp.logical_and(lab_row_ref[...] == lab_col_ref[...], contrast_mask)

    # Numerical stabilization (logits_max is detached in torch; forward identical).
    row_max = jnp.max(sim, axis=1, keepdims=True)
    logits = sim - row_max

    # Softmax denominator over non-self (valid) contrasts.
    e = jnp.exp(logits)
    denom = jnp.sum(jnp.where(contrast_mask, e, 0.0), axis=1, keepdims=True) + 1e-6
    log_denom = jnp.log(denom)

    # Fused reduction: sum(pos*log_prob) = sum(pos*logits) - log_denom*sum(pos).
    pos_f = pos_mask.astype(jnp.float32)
    sum_pos_logits = jnp.sum(pos_f * logits, axis=1, keepdims=True)
    num_pos = jnp.sum(pos_f, axis=1, keepdims=True)
    mean_log_prob_pos = (sum_pos_logits - log_denom * num_pos) / num_pos

    loss_rows = (-loss_scale) * mean_log_prob_pos            # [TM, 1] f32

    if mask_rows:
        anchor_valid = (jax.lax.broadcasted_iota(jnp.int32, (tm, 1), 0)
                        + row_start) < n_valid
        loss_rows = jnp.where(anchor_valid, loss_rows, 0.0)

    o_ref[...] = loss_rows


def supcon_loss(features, labels=None, mask=None, temperature=0.07,
                contrast_mode='all', base_temperature=0.07, block_rows=None):
    """features: [2*batch_size, D].  Returns scalar f32 loss."""
    if contrast_mode != 'all':
        # TODO(synk): contrast_mode='one' (single-view anchors) not implemented.
        raise ValueError("only contrast_mode='all' is implemented")
    if labels is not None and mask is not None:
        raise ValueError('Cannot define both `labels` and `mask`')
    if mask is not None:
        # TODO(synk): explicit (possibly asymmetric) `mask` path not implemented in
        # the Pallas kernel; use `labels` (or None for the SimCLR case) instead.
        raise NotImplementedError('explicit `mask` is not supported by this kernel')

    features = jnp.asarray(features)
    n, d = features.shape
    batch_size = n // 2

    # Labels for the positive mask.  SimCLR (labels=None) <=> eye(batch) mask
    # <=> labels = arange(batch).  mask.repeat(2,2) <=> tiling labels over views.
    if labels is None:
        lab = jnp.arange(batch_size, dtype=jnp.int32)
    else:
        lab = jnp.asarray(labels, dtype=jnp.int32).reshape(-1)
        if lab.shape[0] != batch_size:
            raise ValueError('Num of labels does not match num of features')
    labels_full = jnp.concatenate([lab, lab])                     # [n]

    # Row-tile size: a single sublane-aligned tile for small N; otherwise sized
    # so ~6 live [TM, N_cols] f32 slabs stay around <=24 MiB (fits v7x 64 MiB
    # VMEM) with an upper bound of 256 (MXU-friendly on v6e/v7x, 2x128 on v5e).
    if block_rows is not None:
        tm = max(8, _round_up(int(block_rows), 8))
    elif n <= 512:
        tm = _round_up(n, 8)
    else:
        n_cols_guess = _round_up(n, 128)
        slab_budget = 24 * 1024 * 1024
        tm = slab_budget // (6 * 4 * n_cols_guess)
        tm = min(256, max(8, (tm // 8) * 8))

    n_rows = _round_up(n, tm)          # grid-aligned anchor rows
    n_cols = _round_up(n, 128)         # lane-dense contrast columns
    mask_rows = n_rows != n
    mask_cols = n_cols != n

    # L2-normalize once (f32 math); matmul operands keep the input dtype so
    # bf16 features use the bf16 MXU path with f32 accumulation.  1/T is folded
    # into the anchor operand here (O(N*D)) instead of per-tile in the kernel.
    mm_dtype = jnp.float32 if features.dtype in (jnp.float32, jnp.float64) \
        else jnp.bfloat16
    inv_temp = 1.0 / float(temperature)
    f32 = features.astype(jnp.float32)
    inv_norm = jax.lax.rsqrt(
        jnp.maximum(jnp.sum(f32 * f32, axis=1, keepdims=True), 1e-24))
    fn32 = f32 * inv_norm                                          # [n, d] f32, unit rows
    fa = (fn32 * inv_temp).astype(mm_dtype)                        # anchors (scaled)
    fc = fn32.astype(mm_dtype)                                     # contrasts

    if mask_rows:
        fa = jnp.pad(fa, ((0, n_rows - n), (0, 0)))
    if mask_cols:
        fc = jnp.pad(fc, ((0, n_cols - n), (0, 0)))
    fnT = fc.T                                                     # [d, n_cols] resident RHS

    lab_row = labels_full
    if mask_rows:
        lab_row = jnp.pad(lab_row, (0, n_rows - n), constant_values=-1)
    lab_col = labels_full
    if mask_cols:
        lab_col = jnp.pad(lab_col, (0, n_cols - n), constant_values=-2)
    lab_row = lab_row.reshape(n_rows, 1)
    lab_col = lab_col.reshape(1, n_cols)

    kernel = functools.partial(
        _supcon_kernel,
        loss_scale=float(temperature) / float(base_temperature),
        n_valid=n, mask_cols=mask_cols, mask_rows=mask_rows)

    # VMEM budget: resident fn^T + labels, double-buffered row tiles, and a
    # handful of live [TM, N_cols] f32 slabs inside the kernel.
    mm_bytes = jnp.dtype(mm_dtype).itemsize
    est = (2 * (d * n_cols + tm * d) * mm_bytes
           + 2 * (n_cols + 2 * tm) * 4
           + 8 * tm * n_cols * 4
           + (2 << 20))
    try:
        info = pltpu.get_tpu_info()
        vmem_cap = int(getattr(info, "vmem_capacity_bytes", 64 * 1024 * 1024))
    except Exception:
        vmem_cap = 64 * 1024 * 1024
    vmem_limit = int(min(max(est, 32 * 1024 * 1024),
                         max(32 * 1024 * 1024, vmem_cap - (8 << 20))))

    per_row = pl.pallas_call(
        kernel,
        out_shape=jax.ShapeDtypeStruct((n_rows, 1), jnp.float32),
        grid=(n_rows // tm,),
        in_specs=[
            pl.BlockSpec((tm, 1), lambda i: (i, 0)),        # anchor labels (per row tile)
            pl.BlockSpec((1, n_cols), lambda i: (0, 0)),    # contrast labels (resident)
            pl.BlockSpec((tm, d), lambda i: (i, 0)),        # scaled normalized anchor rows
            pl.BlockSpec((d, n_cols), lambda i: (0, 0)),    # normalized fn^T (resident)
        ],
        out_specs=pl.BlockSpec((tm, 1), lambda i: (i, 0)),
        compiler_params=pltpu.CompilerParams(
            dimension_semantics=("parallel",),
            vmem_limit_bytes=vmem_limit),
    )(lab_row, lab_col, fa, fnT)

    # loss.view(anchor_count, batch_size).mean() == mean over all n anchors.
    return jnp.sum(per_row[:n, 0]) / n


def _supcon_ref(features, labels=None, temperature=0.07, base_temperature=0.07):
    """Pure-JAX reference mirroring the PyTorch forward (for validation)."""
    n = features.shape[0]
    batch_size = n // 2
    f = features.astype(jnp.float32)
    fn = f / jnp.maximum(jnp.linalg.norm(f, axis=1, keepdims=True), 1e-12)
    if labels is None:
        mask_b = jnp.eye(batch_size, dtype=jnp.float32)
    else:
        labels = jnp.asarray(labels).reshape(-1, 1)
        mask_b = (labels == labels.T).astype(jnp.float32)
    sim = fn @ fn.T / temperature
    logits = sim - jnp.max(sim, axis=1, keepdims=True)
    logits_mask = 1.0 - jnp.eye(n, dtype=jnp.float32)
    pos_mask = jnp.tile(mask_b, (2, 2)) * logits_mask
    exp_logits = jnp.exp(logits) * logits_mask
    log_prob = logits - jnp.log(jnp.sum(exp_logits, axis=1, keepdims=True) + 1e-6)
    mlpp = jnp.sum(pos_mask * log_prob, axis=1) / jnp.sum(pos_mask, axis=1)
    return jnp.mean(-(temperature / base_temperature) * mlpp)


if __name__ == "__main__":
    key = jax.random.PRNGKey(0)
    k1, k2, k3 = jax.random.split(key, 3)

    # 1) SimCLR (unsupervised): batch=4, feat_dim=32 -> features [8, 32]
    B, D = 4, 32
    feats = jax.random.normal(k1, (2 * B, D), dtype=jnp.float32)
    labels = jnp.array([0, 1, 0, 1], dtype=jnp.int32)

    out = jax.block_until_ready(supcon_loss(feats))
    ref = _supcon_ref(feats)
    assert abs(float(out) - float(ref)) < 5e-4, (out, ref)

    # 2) Supervised path (labels)
    out = jax.block_until_ready(supcon_loss(feats, labels=labels))
    ref = _supcon_ref(feats, labels=labels)
    assert abs(float(out) - float(ref)) < 5e-4, (out, ref)

    # 3) Row/column padding path (N=12 -> rows padded to 16, cols padded to 128)
    B3 = 6
    feats3 = jax.random.normal(k2, (2 * B3, D), dtype=jnp.float32)
    labels3 = jnp.array([0, 1, 2, 0, 1, 2], dtype=jnp.int32)
    out = jax.block_until_ready(supcon_loss(feats3, labels=labels3))
    ref = _supcon_ref(feats3, labels=labels3)
    assert abs(float(out) - float(ref)) < 5e-4, (out, ref)

    # 4) Multi-tile grid (block_rows=8 -> 4 row tiles over N=32)
    B4 = 16
    feats4 = jax.random.normal(k3, (2 * B4, D), dtype=jnp.float32)
    labels4 = jnp.arange(B4, dtype=jnp.int32) % 4
    out = jax.block_until_ready(supcon_loss(feats4, labels=labels4, block_rows=8))
    ref = _supcon_ref(feats4, labels=labels4)
    assert abs(float(out) - float(ref)) < 5e-4, (out, ref)

    # 5) bf16 feature path (bf16 MXU operands, f32 accumulation) -- loose tolerance
    feats_bf16 = feats.astype(jnp.bfloat16)
    out = jax.block_until_ready(supcon_loss(feats_bf16, labels=labels))
    ref = _supcon_ref(feats_bf16.astype(jnp.float32), labels=labels)
    assert abs(float(out) - float(ref)) < 0.2, (out, ref)

    print("KERNEL_OK")
</pallas_src>

<mosaic_0001>
module attributes {stable_mosaic.version = 11 : i64} {
  func.func @_supcon_kernel(%arg0: i32, %arg1: memref<8x1xi32, #tpu.memory_space<vmem>>, %arg2: memref<1x128xi32, #tpu.memory_space<vmem>>, %arg3: memref<8x32xf32, #tpu.memory_space<vmem>>, %arg4: memref<32x128xf32, #tpu.memory_space<vmem>>, %arg5: memref<8x1xf32, #tpu.memory_space<vmem>>) attributes {dimension_semantics = [#tpu.dimension_semantics<parallel>], iteration_bounds = array<i64: 1>, scalar_prefetch = 0 : i64, scratch_operands = 0 : i64, tpu.core_type = #tpu.core_type<tc>, window_params = [{transform_indices = @transform_0, window_bounds = array<i64: 8, 1>}, {pipeline_mode = #tpu.pipeline_mode<synchronous>, transform_indices = @transform_1, window_bounds = array<i64: 1, 128>}, {transform_indices = @transform_2, window_bounds = array<i64: 8, 32>}, {pipeline_mode = #tpu.pipeline_mode<synchronous>, transform_indices = @transform_3, window_bounds = array<i64: 32, 128>}, {transform_indices = @transform_4, window_bounds = array<i64: 8, 1>}]} {
    %c8_i32 = arith.constant 8 : i32
    %0 = arith.muli %arg0, %c8_i32 : i32
    %c0 = arith.constant 0 : index
    %c0_0 = arith.constant 0 : index
    %1 = vector.load %arg3[%c0, %c0_0] : memref<8x32xf32, #tpu.memory_space<vmem>>, vector<8x32xf32>
    %c0_1 = arith.constant 0 : index
    %c0_2 = arith.constant 0 : index
    %2 = vector.load %arg4[%c0_1, %c0_2] : memref<32x128xf32, #tpu.memory_space<vmem>>, vector<32x128xf32>
    %cst = arith.constant dense<0.000000e+00> : vector<8x128xf32>
    %3 = tpu.matmul %1, %2, %cst {dimension_numbers = #tpu.dot_dimension_numbers<[1], [0], [0], [1], [0, 0, 1, 1], [], []>} : vector<8x32xf32>, vector<32x128xf32>, vector<8x128xf32> -> vector<8x128xf32>
    %4 = tpu.iota {dimensions = array<i32: 1>} : vector<8x128xi32>
    %5 = tpu.iota {dimensions = array<i32: 0>} : vector<8x128xi32>
    %6 = vector.broadcast %0 : i32 to vector<8x128xi32>
    %7 = arith.addi %5, %6 : vector<8x128xi32>
    %8 = arith.cmpi ne, %7, %4 : vector<8x128xi32>
    %c8_i32_3 = arith.constant 8 : i32
    %9 = vector.broadcast %c8_i32_3 : i32 to vector<8x128xi32>
    %10 = arith.cmpi slt, %4, %9 : vector<8x128xi32>
    %11 = arith.andi %8, %10 : vector<8x128xi1>
    %c0_4 = arith.constant 0 : index
    %c0_5 = arith.constant 0 : index
    %12 = vector.load %arg1[%c0_4, %c0_5] : memref<8x1xi32, #tpu.memory_space<vmem>>, vector<8x1xi32>
    %c0_6 = arith.constant 0 : index
    %c0_7 = arith.constant 0 : index
    %13 = vector.load %arg2[%c0_6, %c0_7] : memref<1x128xi32, #tpu.memory_space<vmem>>, vector<1x128xi32>
    %14 = vector.broadcast %12 : vector<8x1xi32> to vector<8x128xi32>
    %15 = vector.broadcast %13 : vector<1x128xi32> to vector<8x128xi32>
    %16 = arith.cmpi eq, %14, %15 : vector<8x128xi32>
    %17 = arith.andi %16, %11 : vector<8x128xi1>
    %cst_8 = arith.constant dense<0xFF800000> : vector<8xf32>
    %18 = vector.multi_reduction <maximumf>, %3, %cst_8 [1] : vector<8x128xf32> to vector<8xf32>
    %19 = vector.shape_cast %18 : vector<8xf32> to vector<8x1xf32>
    %20 = vector.broadcast %19 : vector<8x1xf32> to vector<8x128xf32>
    %21 = arith.subf %3, %20 : vector<8x128xf32>
    %22 = math.exp %21 : vector<8x128xf32>
    %cst_9 = arith.constant 0.000000e+00 : f32
    %23 = vector.broadcast %cst_9 : f32 to vector<8x128xf32>
    %24 = arith.select %11, %22, %23 : vector<8x128xi1>, vector<8x128xf32>
    %cst_10 = arith.constant dense<0.000000e+00> : vector<8xf32>
    %25 = vector.multi_reduction <add>, %24, %cst_10 [1] : vector<8x128xf32> to vector<8xf32>
    %26 = vector.shape_cast %25 : vector<8xf32> to vector<8x1xf32>
    %cst_11 = arith.constant 9.99999997E-7 : f32
    %27 = vector.broadcast %cst_11 : f32 to vector<8x1xf32>
    %28 = arith.addf %26, %27 : vector<8x1xf32>
    %29 = math.log %28 : vector<8x1xf32>
    %30 = arith.extui %17 : vector<8x128xi1> to vector<8x128xi32>
    %31 = arith.sitofp %30 : vector<8x128xi32> to vector<8x128xf32>
    %32 = arith.mulf %31, %21 : vector<8x128xf32>
    %cst_12 = arith.constant dense<0.000000e+00> : vector<8xf32>
    %33 = vector.multi_reduction <add>, %32, %cst_12 [1] : vector<8x128xf32> to vector<8xf32>
    %34 = vector.shape_cast %33 : vector<8xf32> to vector<8x1xf32>
    %cst_13 = arith.constant dense<0.000000e+00> : vector<8xf32>
    %35 = vector.multi_reduction <add>, %31, %cst_13 [1] : vector<8x128xf32> to vector<8xf32>
    %36 = vector.shape_cast %35 : vector<8xf32> to vector<8x1xf32>
    %37 = arith.mulf %29, %36 : vector<8x1xf32>
    %38 = arith.subf %34, %37 : vector<8x1xf32>
    %39 = arith.divf %38, %36 : vector<8x1xf32>
    %cst_14 = arith.constant -1.000000e+00 : f32
    %40 = vector.broadcast %cst_14 : f32 to vector<8x1xf32>
    %41 = arith.mulf %40, %39 : vector<8x1xf32>
    %c0_15 = arith.constant 0 : index
    %c0_16 = arith.constant 0 : index
    %42 = vector.load %arg5[%c0_15, %c0_16] : memref<8x1xf32, #tpu.memory_space<vmem>>, vector<8x1xf32>
    tpu.vector_store %arg5[%c0_15, %c0_16], %41 {strides = array<i32>} : memref<8x1xf32, #tpu.memory_space<vmem>>, vector<8x1xf32>,
    return
  }
  func.func @transform_0(%arg0: i32) -> (i32, i32) {
    %c0_i32 = arith.constant 0 : i32
    %c0_i32_0 = arith.constant 0 : i32
    return %arg0, %c0_i32 : i32, i32
  }
  func.func @transform_1(%arg0: i32) -> (i32, i32) {
    %c0_i32 = arith.constant 0 : i32
    %c0_i32_0 = arith.constant 0 : i32
    %c0_i32_1 = arith.constant 0 : i32
    return %c0_i32, %c0_i32_0 : i32, i32
  }
  func.func @transform_2(%arg0: i32) -> (i32, i32) {
    %c0_i32 = arith.constant 0 : i32
    %c0_i32_0 = arith.constant 0 : i32
    return %arg0, %c0_i32 : i32, i32
  }
  func.func @transform_3(%arg0: i32) -> (i32, i32) {
    %c0_i32 = arith.constant 0 : i32
    %c0_i32_0 = arith.constant 0 : i32
    %c0_i32_1 = arith.constant 0 : i32
    return %c0_i32, %c0_i32_0 : i32, i32
  }
  func.func @transform_4(%arg0: i32) -> (i32, i32) {
    %c0_i32 = arith.constant 0 : i32
    %c0_i32_0 = arith.constant 0 : i32
    return %arg0, %c0_i32 : i32, i32
  }
}

</mosaic_0001>

<llo_original>
// kernel: tpu_custom_call.1
$region0: #{tpu_custom_call.1}
  #allocation0 [shape = 'u32[]', space=smem, size = 0x4, offset = 0x4, fixed_abs, tag = 'smem constant byte address 0x4 - core index']
  #allocation1 [shape = 'u32[144,128]{1,0:T(1,128)}', space=vmem, size = 0x12000, scoped, tag = 'internal scratch']
  %s0 = inlined_call_operand.vmem [shape: s32[8,1], index: 0, kind: input, shape index: {}]
  %s1 = inlined_call_operand.vmem [shape: s32[1,128], index: 1, kind: input, shape index: {}]
  %s2 = inlined_call_operand.vmem [shape: f32[8,32], index: 2, kind: input, shape index: {}]
  %s3 = inlined_call_operand.hbm [shape: f32[32,128], index: 3, kind: input, shape index: {}]
  %s4 = inlined_call_operand.vmem [shape: f32[8,1], index: 4, kind: output, shape index: {}]
  %s5 = sld [smem:[#allocation0]]
  $region30: #{tpu_custom_call.1} parent=0
    _
  %s7 = ssub.s32 1, %s5
  %s8 = scalar_select 0, %s7, %s5
  $region1: #{tpu_custom_call.1} parent=0
    #allocation2 [shape = 'u8[16384]{0}', space=vmem, size = 0x4000, scoped, tag = 'input window, operand 3, single buffered']
    #allocation3 [shape = 's32[1]{0}', space=sflag, size = 0x4, scoped, tag = 'scoped memory for tpu_custom_call.1']
    %9 = vsyncpa [#allocation3], 0
    // Predicated region
    $region2: #{tpu_custom_call.1} parent=1 // pred_check
      _
    $region3: #{tpu_custom_call.1} parent=1 // pred_check_branch
      %11 = sbr.rel (0) target = $region5
    $region4: #{tpu_custom_call.1} parent=1 // pred_region
      _
    $region5: #{tpu_custom_call.1} parent=1 // pred_fallthru
      _
    // Predicated region
    $region6: #{tpu_custom_call.1} parent=1 // pred_check
      _
    $region7: #{tpu_custom_call.1} parent=1 // pred_check_branch
      %13 = sbr.rel (0) target = $region9
    $region8: #{tpu_custom_call.1} parent=1 // pred_region
      _
    $region9: #{tpu_custom_call.1} parent=1 // pred_fallthru
      _
    // Predicated region
    $region10: #{tpu_custom_call.1} parent=1 // pred_check
      _
    $region11: #{tpu_custom_call.1} parent=1 // pred_check_branch
      %15 = sbr.rel (0) target = $region13
    $region12: #{tpu_custom_call.1} parent=1 // pred_region
      _
    $region13: #{tpu_custom_call.1} parent=1 // pred_fallthru
      _
    // Predicated region
    $region14: #{tpu_custom_call.1} parent=1 // pred_check
      _
    $region15: #{tpu_custom_call.1} parent=1 // pred_check_branch
      %17 = sbr.rel (0) target = $region17
    $region16: #{tpu_custom_call.1} parent=1 // pred_region
      %s19 = ssub.s32 512, 512
      %20 = vsyncadd [#allocation3], %s19
      %s21 = sshll.u32 [#allocation2], 4
      %s22 = int_to_ptr.vmem [resolvable:$true] %s21
      %27 = dma.hbm_to_vmem [thread:$0]  %s3, 512, %s22, [#allocation3], 128, 128, 8
    $region17: #{tpu_custom_call.1} parent=1 // pred_fallthru
      _
    // Predicated region
    $region18: #{tpu_custom_call.1} parent=1 // pred_check
      _
    $region19: #{tpu_custom_call.1} parent=1 // pred_check_branch
      %29 = sbr.rel (0) target = $region21
    $region20: #{tpu_custom_call.1} parent=1 // pred_region
      %30 = dma.done [#allocation3], 512
    $region21: #{tpu_custom_call.1} parent=1 // pred_fallthru
      _
    %s31 = smul.u32 0, 8
    %v32 = vld [vmem:[%s2] sm:$0xff]
    %v33 = vld [vmem:[#allocation2] sm:$0xff]
    %v34 = vld [vmem:[#allocation2 + $0x8] sm:$0xff]
    %v35 = vld [vmem:[#allocation2 + $0x10] sm:$0xff]
    %v36 = vld [vmem:[#allocation2 + $0x18] sm:$0xff]
    %vm37 = vcmask 261120
    %v39 = vsel %vm37, %v32, 0
    %41 = vmatprep.subr.mxu0 0.0
    %42 = vmatpush1.msra.mxu0 %v33
    %43 = vmatprep.subr.mxu0 0.0
    %44 = vmatpush1.msra.mxu0 %v34
    %45 = vmatprep.subr.mxu0 0.0
    %46 = vmatpush1.msra.mxu0 %v35
    %47 = vmatprep.subr.mxu0 0.0
    %48 = vmatpush1.msra.mxu0 %v36
    %49 = vmatprep.subr.mxu0 0.0
    %50 = vmatpush1.msra.mxu0 0.0
    %51 = vmatprep.subr.mxu0 0.0
    %52 = vmatpush1.msra.mxu0 0.0
    %53 = vmatprep.subr.mxu0 0.0
    %54 = vmatpush1.msra.mxu0 0.0
    %55 = vmatprep.subr.mxu0 0.0
    %56 = vmatpush1.msra.mxu0 0.0
    %57 = vmatprep.subr.mxu0 0.0
    %58 = vmatpush1.msra.mxu0 0.0
    %59 = vmatprep.subr.mxu0 0.0
    %60 = vmatpush1.msra.mxu0 0.0
    %61 = vmatprep.subr.mxu0 0.0
    %62 = vmatpush1.msra.mxu0 0.0
    %63 = vmatprep.subr.mxu0 0.0
    %64 = vmatpush1.msra.mxu0 0.0
    %65 = vmatprep.subr.mxu0 0.0
    %66 = vmatpush1.msra.mxu0 0.0
    %67 = vmatprep.subr.mxu0 0.0
    %68 = vmatpush1.msra.mxu0 0.0
    %69 = vmatprep.subr.mxu0 0.0
    %70 = vmatpush1.msra.mxu0 0.0
    %71 = vmatprep.subr.mxu0 0.0
    %72 = vmatpush1.msra.mxu0 0.0
    %73 = vmatprep.subr.mxu0 0.0
    %74 = vmatpush1.msra.mxu0 0.0
    %75 = vmatprep.subr.mxu0 0.0
    %76 = vmatpush1.msra.mxu0 0.0
    %77 = vmatprep.subr.mxu0 0.0
    %78 = vmatpush1.msra.mxu0 0.0
    %79 = vmatprep.subr.mxu0 0.0
    %80 = vmatpush1.msra.mxu0 0.0
    %81 = vmatprep.subr.mxu0 0.0
    %82 = vmatpush1.msra.mxu0 0.0
    %83 = vmatprep.subr.mxu0 0.0
    %84 = vmatpush1.msra.mxu0 0.0
    %85 = vmatprep.subr.mxu0 0.0
    %86 = vmatpush1.msra.mxu0 0.0
    %87 = vmatprep.subr.mxu0 0.0
    %88 = vmatpush1.msra.mxu0 0.0
    %89 = vmatprep.subr.mxu0 0.0
    %90 = vmatpush1.msra.mxu0 0.0
    %91 = vmatprep.subr.mxu0 0.0
    %92 = vmatpush1.msra.mxu0 0.0
    %93 = vmatprep.subr.mxu0 0.0
    %94 = vmatpush1.msra.mxu0 0.0
    %95 = vmatprep.subr.mxu0 0.0
    %96 = vmatpush1.msra.mxu0 0.0
    %97 = vmatprep.subr.mxu0 0.0
    %98 = vmatpush1.msra.mxu0 0.0
    %99 = vmatprep.subr.mxu0 0.0
    %100 = vmatpush1.msra.mxu0 0.0
    %101 = vmatprep.subr.mxu0 0.0
    %102 = vmatpush1.msra.mxu0 0.0
    %103 = vmatprep.subr.mxu0 0.0
    %104 = vmatpush1.msra.mxu0 0.0
    %105 = vmatprep.mubr.f32.mxu0 0.0
    %106 = vmatmul.mubr.f32.gmra.mrb[0].mxu0 %v39
    %v107 = vpop.f32.mrb[0].mxu0
    %v108 = vadd.f32 0.0, %v107
    %v109 = vpop.f32.mrb[0].mxu0
    %110 = vdwg.mxu0
    %v111 = vlaneseq
    %v112 = vand.u32 %v111, 127
    %v113 = vlaneseq
    %v114 = vshrl.u32 %v113, 7
    %v115 = vstv %s31
    %v116 = vadd.s32 %v114, %v115
    %vm117 = vcmp.ne.s32.totalorder %v116, %v112
    %vm118 = vcmp.lt.s32.totalorder %v112, 8
    %vm119 = vmand %vm117, %vm118
    %v120 = vld [vmem:[%s0] sm:$0xff]
    %v121 = vld [vmem:[%s1] sm:$0x1]
    %122 = vset.pattern.permute.xlu0 0
    %123 = vperm.xlu0 %122, %v120
    %v124 = vpop.permute.xlu0 %123
    %v125 = vlaneseq
    %v126 = vshrl.u32 %v125, 7
    %v127 = vsub.s32 0, %v126
    %v128 = vrot.slane %v121, %v127
    %vm129 = vcmp.eq.s32.totalorder %v124, %v128
    %vm130 = vmand %vm129, %vm119
    %131 = vmax.xlane.f32.xlu0 %v108
    %v132 = vpop.xlane.xlu0 %131
    %v133 = vsub.f32 %v108, %v132
    %v134 = vmul.f32 %v133, 1.442695
    %v135 = vpow.pop %v134
    %v136 = vsel %vm119, %v135, 0.0
    %137 = vadd.xlane.f32.xlu0 %v136
    %v138 = vpop.xlane.xlu0 %137
    %v139 = vadd.f32 %v138, 1e-06
    %v140 = vlog2.pop %v139
    %v141 = vmul.f32 %v140, 0.6931472
    %v142 = vsel %vm130, 1, 0
    %v143 = vcvt.s32.f32 %v142
    %v144 = vmul.f32 %v143, %v133
    %145 = vadd.xlane.f32.xlu0 %v144
    %v146 = vpop.xlane.xlu0 %145
    %147 = vadd.xlane.f32.xlu0 %v143
    %v148 = vpop.xlane.xlu0 %147
    %v149 = vmul.f32 %v141, %v148
    %v150 = vsub.f32 %v146, %v149
    %v151 = vrcp.pop %v148
    %v152 = vmul.f32 %v150, %v151
    %v153 = vmul.f32 %v152, -1.0
    %vm154 = vcmask 7168
    %155 = vst.msk [vmem:[%s4] sm:$0xff] %vm154, %v153
    // Predicated region
    $region22: #{tpu_custom_call.1} parent=1 // pred_check
      _
    $region23: #{tpu_custom_call.1} parent=1 // pred_check_branch
      %157 = sbr.rel (0) target = $region25
    $region24: #{tpu_custom_call.1} parent=1 // pred_region
      _
    $region25: #{tpu_custom_call.1} parent=1 // pred_fallthru
      _
    // Predicated region
    $region26: #{tpu_custom_call.1} parent=1 // pred_check
      _
    $region27: #{tpu_custom_call.1} parent=1 // pred_check_branch
      %159 = sbr.rel (0) target = $region29
    $region28: #{tpu_custom_call.1} parent=1 // pred_region
      _
    $region29: #{tpu_custom_call.1} parent=1 // pred_fallthru
      _
    %160 = vsyncpa [#allocation3], 1

</llo_original>
